<compile_context>
chip_gen: v7x
topology: tpu7x:2x2x1
jax: 0.10.0
libtpu: 0.0.40
codegen_flags: <defaults>
</compile_context>

<pallas_src>
import functools

import jax
import jax.numpy as jnp
from jax import lax
from jax.experimental import pallas as pl
from jax.experimental.pallas import tpu as pltpu

KS = 7
PAD = (KS - 1) // 2


def _spatial_gate_kernel(h, w, c_chan,
                         wmat_ref, bias_ref, rmask_ref, cmask_ref,
                         x_ref, o_ref):
    # wmat_ref : VMEM (8, 16)  f32  -- wmat[dw+3, ci*7+dh+3] = folded conv weight
    #                                   (rows/cols 14..15 and row 7 are zero pad)
    # bias_ref : SMEM (1,)     f32  -- folded BatchNorm bias
    # rmask_ref: VMEM (8, HW)  f32  -- row-validity masks per vertical offset dh
    # cmask_ref: VMEM (8, HW)  f32  -- col-validity masks per horizontal offset dw
    # x_ref    : VMEM (C, HW)       -- one image (batch dim squeezed)
    # o_ref    : VMEM (C, HW)
    hw = h * w

    # --- Channel pooling: stream per-channel slices (keeps vreg pressure ~O(HW),
    #     the full x block is NOT materialised here).  1/C is folded into the
    #     mean-channel weights, so the mean pool becomes a plain sum.
    x0 = x_ref[0:1, :].astype(jnp.float32)                     # (1, HW)
    pmax = x0
    psum = x0
    for c in range(1, c_chan):
        xc = x_ref[c:c + 1, :].astype(jnp.float32)
        pmax = jnp.maximum(pmax, xc)
        psum = psum + xc

    rmask = rmask_ref[...]                                     # (8, HW)
    cmask = cmask_ref[...]                                     # (8, HW)

    # --- 14 vertically shifted + row-masked maps (XLU roll + one vmul each).
    #     roll brings spatial row (r+dh) onto row r; the {0,1} mask reproduces
    #     the conv's zero padding at the top/bottom borders (and kills wrap).
    maps = []
    for pooled in (pmax, psum):                # conv channel 0 = max, 1 = mean
        for dh in range(-PAD, PAD + 1):
            amt = (-dh * w) % hw
            v = pltpu.roll(pooled, shift=amt, axis=1) if amt else pooled
            maps.append(v * rmask[dh + PAD:dh + PAD + 1, :])
    maps.append(jnp.zeros((2, hw), jnp.float32))               # pad 14 -> 16 rows
    s = jnp.concatenate(maps, axis=0)                          # (16, HW)

    # --- All 98 tap-weighted sums in one MXU matmul: (8,16) @ (16,HW) -> (8,HW).
    #     Row dw+3 of the result is the per-dw partial map (rows 7 is zero).
    partial = jnp.dot(wmat_ref[...], s, preferred_element_type=jnp.float32)

    # --- Horizontal taps: one lane roll + col-mask multiply per dw, then add.
    conv = None
    for dw in range(-PAD, PAD + 1):
        rowv = partial[dw + PAD:dw + PAD + 1, :]               # (1, HW)
        amt = (-dw) % hw
        if amt:
            rowv = pltpu.roll(rowv, shift=amt, axis=1)
        term = rowv * cmask[dw + PAD:dw + PAD + 1, :]
        conv = term if conv is None else conv + term           # (1, HW)

    y = conv + bias_ref[0]                                     # folded BatchNorm
    # sigmoid via EUP exp + EUP approximate reciprocal (no VPU divide).
    scale = pl.reciprocal(1.0 + jnp.exp(-y), approx=True)      # (1, HW)
    scale = scale.astype(o_ref.dtype)

    # --- Gate: full-block elementwise multiply (lane-dense store); Mosaic
    #     streams this vreg-by-vreg, so x is only transiently live here.
    o_ref[...] = x_ref[...] * scale


def spatial_gate(x, conv_w, bn_gamma, bn_beta, bn_mean, bn_var, eps=1e-5):
    """x: (B, C, H, W); conv_w: (1, 2, 7, 7) OIHW; BN params: shape (1,) each."""
    B, C, H, W = x.shape
    HW = H * W

    # Fold eval-mode BatchNorm and the mean-pool's 1/C into the conv weights:
    #   a*conv(w, pooled) + b == conv(a*w, pooled) + b,   mean = sum * (1/C).
    a = (bn_gamma / jnp.sqrt(bn_var + eps)).astype(jnp.float32)        # (1,)
    bias = (bn_beta - bn_mean * a).astype(jnp.float32)                 # (1,)
    w_eff = conv_w.astype(jnp.float32) * a[0]                          # (1,2,7,7)
    w_eff = w_eff.at[:, 1].multiply(1.0 / C)          # mean channel -> plain sum

    # Weight matrix for the MXU contraction: wmat[dw+3, ci*7 + dh+3], padded to
    # a sublane/lane friendly (8, 16).
    wmat = jnp.zeros((8, 16), jnp.float32)
    wmat = wmat.at[:KS, :2 * KS].set(
        jnp.transpose(w_eff[0], (2, 0, 1)).reshape(KS, 2 * KS))

    # Precomputed {0,1} border masks (one row per tap offset, padded to 8 rows).
    pos = jnp.arange(HW, dtype=jnp.int32)
    row_idx = pos // W
    col_idx = pos % W
    offs = jnp.arange(-PAD, PAD + 1, dtype=jnp.int32)[:, None]         # (7, 1)
    rmask = jnp.concatenate(
        [((row_idx[None, :] + offs >= 0) & (row_idx[None, :] + offs < H)
          ).astype(jnp.float32),
         jnp.zeros((1, HW), jnp.float32)], axis=0)                     # (8, HW)
    cmask = jnp.concatenate(
        [((col_idx[None, :] + offs >= 0) & (col_idx[None, :] + offs < W)
          ).astype(jnp.float32),
         jnp.zeros((1, HW), jnp.float32)], axis=0)                     # (8, HW)

    x2d = x.reshape(B, C, HW)                      # lane-dense view of x

    kernel = functools.partial(_spatial_gate_kernel, H, W, C)
    out2d = pl.pallas_call(
        kernel,
        out_shape=jax.ShapeDtypeStruct((B, C, HW), x.dtype),
        grid=(B,),
        in_specs=[
            pl.BlockSpec((8, 16), lambda i: (0, 0)),                # weights (VMEM)
            pl.BlockSpec(memory_space=pltpu.MemorySpace.SMEM),      # bias scalar
            pl.BlockSpec((8, HW), lambda i: (0, 0)),                # row masks
            pl.BlockSpec((8, HW), lambda i: (0, 0)),                # col masks
            pl.BlockSpec((None, C, HW), lambda i: (i, 0, 0)),       # x (batch squeezed)
        ],
        out_specs=pl.BlockSpec((None, C, HW), lambda i: (i, 0, 0)),
        # Pure elementwise gate of x -> write the result in place.  Callers
        # under jit should donate x (or not reuse it); otherwise XLA copies.
        input_output_aliases={4: 0},
        compiler_params=pltpu.CompilerParams(
            # Independent images: shard the grid across v7x's 2 TensorCores.
            dimension_semantics=("parallel",),
        ),
    )(wmat, bias, rmask, cmask, x2d)
    return out2d.reshape(B, C, H, W)


def spatial_gate_reference(x, conv_w, bn_gamma, bn_beta, bn_mean, bn_var, eps=1e-5):
    pooled = jnp.concatenate(
        [jnp.max(x, axis=1, keepdims=True), jnp.mean(x, axis=1, keepdims=True)],
        axis=1)
    conv = lax.conv_general_dilated(
        pooled, conv_w, window_strides=(1, 1),
        padding=[(PAD, PAD), (PAD, PAD)],
        dimension_numbers=("NCHW", "OIHW", "NCHW"))
    a = bn_gamma / jnp.sqrt(bn_var + eps)
    b = bn_beta - bn_mean * a
    y = conv * a[None, :, None, None] + b[None, :, None, None]
    return x * jax.nn.sigmoid(y)


if __name__ == "__main__":
    key = jax.random.PRNGKey(0)
    kx, kw, kg, kb, km, kv = jax.random.split(key, 6)

    B, C, H, W = 2, 4, 16, 16
    x = jax.random.normal(kx, (B, C, H, W), dtype=jnp.float32)

    # Deterministic synthetic parameters (shapes from the module __init__).
    conv_w = 0.1 * jax.random.normal(kw, (1, 2, KS, KS), dtype=jnp.float32)
    bn_gamma = 1.0 + 0.1 * jax.random.normal(kg, (1,), dtype=jnp.float32)
    bn_beta = 0.1 * jax.random.normal(kb, (1,), dtype=jnp.float32)
    bn_mean = 0.1 * jax.random.normal(km, (1,), dtype=jnp.float32)
    bn_var = jnp.abs(jax.random.normal(kv, (1,), dtype=jnp.float32)) + 0.5

    out = spatial_gate(x, conv_w, bn_gamma, bn_beta, bn_mean, bn_var)
    out = jax.block_until_ready(out)

    ref = spatial_gate_reference(x, conv_w, bn_gamma, bn_beta, bn_mean, bn_var)
    assert out.shape == (B, C, H, W)
    # Tolerance 2e-3: the sigmoid uses the EUP's approximate reciprocal
    # (~1e-4 relative error); any structural bug (wrong shift/mask/weights)
    # would produce O(0.1-1) errors and still fail this check.
    err = float(jnp.max(jnp.abs(out - ref)))
    assert jnp.allclose(out, ref, atol=2e-3, rtol=2e-3), err

    print("KERNEL_OK")
</pallas_src>

<mosaic_0001>
module attributes {stable_mosaic.version = 11 : i64} {
  func.func @_spatial_gate_kernel(%arg0: i32, %arg1: memref<8x16xf32, #tpu.memory_space<vmem>>, %arg2: memref<1xf32, #tpu.memory_space<smem>>, %arg3: memref<8x256xf32, #tpu.memory_space<vmem>>, %arg4: memref<8x256xf32, #tpu.memory_space<vmem>>, %arg5: memref<1x4x256xf32, #tpu.memory_space<vmem>>, %arg6: memref<1x4x256xf32, #tpu.memory_space<vmem>>) attributes {dimension_semantics = [#tpu.dimension_semantics<parallel>], iteration_bounds = array<i64: 2>, scalar_prefetch = 0 : i64, scratch_operands = 0 : i64, tpu.core_type = #tpu.core_type<tc>, window_params = [{pipeline_mode = #tpu.pipeline_mode<synchronous>, transform_indices = @transform_0, window_bounds = array<i64: 8, 16>}, {transform_indices = @transform_1, window_bounds = array<i64: 1>}, {pipeline_mode = #tpu.pipeline_mode<synchronous>, transform_indices = @transform_2, window_bounds = array<i64: 8, 256>}, {pipeline_mode = #tpu.pipeline_mode<synchronous>, transform_indices = @transform_3, window_bounds = array<i64: 8, 256>}, {transform_indices = @transform_4, window_bounds = array<i64: 1, 4, 256>}, {transform_indices = @transform_5, window_bounds = array<i64: 1, 4, 256>}]} {
    %c0 = arith.constant 0 : index
    %c0_0 = arith.constant 0 : index
    %c0_1 = arith.constant 0 : index
    %0 = vector.load %arg5[%c0, %c0_0, %c0_1] : memref<1x4x256xf32, #tpu.memory_space<vmem>>, vector<1x1x256xf32>
    %1 = vector.shape_cast %0 : vector<1x1x256xf32> to vector<1x256xf32>
    %c0_2 = arith.constant 0 : index
    %c1 = arith.constant 1 : index
    %c0_3 = arith.constant 0 : index
    %2 = vector.load %arg5[%c0_2, %c1, %c0_3] : memref<1x4x256xf32, #tpu.memory_space<vmem>>, vector<1x1x256xf32>
    %3 = vector.shape_cast %2 : vector<1x1x256xf32> to vector<1x256xf32>
    %4 = arith.maximumf %1, %3 : vector<1x256xf32>
    %5 = arith.addf %1, %3 : vector<1x256xf32>
    %c0_4 = arith.constant 0 : index
    %c2 = arith.constant 2 : index
    %c0_5 = arith.constant 0 : index
    %6 = vector.load %arg5[%c0_4, %c2, %c0_5] : memref<1x4x256xf32, #tpu.memory_space<vmem>>, vector<1x1x256xf32>
    %7 = vector.shape_cast %6 : vector<1x1x256xf32> to vector<1x256xf32>
    %8 = arith.maximumf %4, %7 : vector<1x256xf32>
    %9 = arith.addf %5, %7 : vector<1x256xf32>
    %c0_6 = arith.constant 0 : index
    %c3 = arith.constant 3 : index
    %c0_7 = arith.constant 0 : index
    %10 = vector.load %arg5[%c0_6, %c3, %c0_7] : memref<1x4x256xf32, #tpu.memory_space<vmem>>, vector<1x1x256xf32>
    %11 = vector.shape_cast %10 : vector<1x1x256xf32> to vector<1x256xf32>
    %12 = arith.maximumf %8, %11 : vector<1x256xf32>
    %13 = arith.addf %9, %11 : vector<1x256xf32>
    %c0_8 = arith.constant 0 : index
    %c0_9 = arith.constant 0 : index
    %14 = vector.load %arg3[%c0_8, %c0_9] : memref<8x256xf32, #tpu.memory_space<vmem>>, vector<8x256xf32>
    %c0_10 = arith.constant 0 : index
    %c0_11 = arith.constant 0 : index
    %15 = vector.load %arg4[%c0_10, %c0_11] : memref<8x256xf32, #tpu.memory_space<vmem>>, vector<8x256xf32>
    %c48_i32 = arith.constant 48 : i32
    %16 = tpu.dynamic_rotate %12 by %c48_i32 dim 1 : vector<1x256xf32>, i32 -> vector<1x256xf32>
    %17 = vector.extract_strided_slice %14 {offsets = [0, 0], sizes = [1, 256], strides = [1, 1]} : vector<8x256xf32> to vector<1x256xf32>
    %18 = arith.mulf %16, %17 : vector<1x256xf32>
    %c32_i32 = arith.constant 32 : i32
    %19 = tpu.dynamic_rotate %12 by %c32_i32 dim 1 : vector<1x256xf32>, i32 -> vector<1x256xf32>
    %20 = vector.extract_strided_slice %14 {offsets = [1, 0], sizes = [1, 256], strides = [1, 1]} : vector<8x256xf32> to vector<1x256xf32>
    %21 = arith.mulf %19, %20 : vector<1x256xf32>
    %c16_i32 = arith.constant 16 : i32
    %22 = tpu.dynamic_rotate %12 by %c16_i32 dim 1 : vector<1x256xf32>, i32 -> vector<1x256xf32>
    %23 = vector.extract_strided_slice %14 {offsets = [2, 0], sizes = [1, 256], strides = [1, 1]} : vector<8x256xf32> to vector<1x256xf32>
    %24 = arith.mulf %22, %23 : vector<1x256xf32>
    %25 = vector.extract_strided_slice %14 {offsets = [3, 0], sizes = [1, 256], strides = [1, 1]} : vector<8x256xf32> to vector<1x256xf32>
    %26 = arith.mulf %12, %25 : vector<1x256xf32>
    %c240_i32 = arith.constant 240 : i32
    %27 = tpu.dynamic_rotate %12 by %c240_i32 dim 1 : vector<1x256xf32>, i32 -> vector<1x256xf32>
    %28 = vector.extract_strided_slice %14 {offsets = [4, 0], sizes = [1, 256], strides = [1, 1]} : vector<8x256xf32> to vector<1x256xf32>
    %29 = arith.mulf %27, %28 : vector<1x256xf32>
    %c224_i32 = arith.constant 224 : i32
    %30 = tpu.dynamic_rotate %12 by %c224_i32 dim 1 : vector<1x256xf32>, i32 -> vector<1x256xf32>
    %31 = vector.extract_strided_slice %14 {offsets = [5, 0], sizes = [1, 256], strides = [1, 1]} : vector<8x256xf32> to vector<1x256xf32>
    %32 = arith.mulf %30, %31 : vector<1x256xf32>
    %c208_i32 = arith.constant 208 : i32
    %33 = tpu.dynamic_rotate %12 by %c208_i32 dim 1 : vector<1x256xf32>, i32 -> vector<1x256xf32>
    %34 = vector.extract_strided_slice %14 {offsets = [6, 0], sizes = [1, 256], strides = [1, 1]} : vector<8x256xf32> to vector<1x256xf32>
    %35 = arith.mulf %33, %34 : vector<1x256xf32>
    %c48_i32_12 = arith.constant 48 : i32
    %36 = tpu.dynamic_rotate %13 by %c48_i32_12 dim 1 : vector<1x256xf32>, i32 -> vector<1x256xf32>
    %37 = vector.extract_strided_slice %14 {offsets = [0, 0], sizes = [1, 256], strides = [1, 1]} : vector<8x256xf32> to vector<1x256xf32>
    %38 = arith.mulf %36, %37 : vector<1x256xf32>
    %c32_i32_13 = arith.constant 32 : i32
    %39 = tpu.dynamic_rotate %13 by %c32_i32_13 dim 1 : vector<1x256xf32>, i32 -> vector<1x256xf32>
    %40 = vector.extract_strided_slice %14 {offsets = [1, 0], sizes = [1, 256], strides = [1, 1]} : vector<8x256xf32> to vector<1x256xf32>
    %41 = arith.mulf %39, %40 : vector<1x256xf32>
    %c16_i32_14 = arith.constant 16 : i32
    %42 = tpu.dynamic_rotate %13 by %c16_i32_14 dim 1 : vector<1x256xf32>, i32 -> vector<1x256xf32>
    %43 = vector.extract_strided_slice %14 {offsets = [2, 0], sizes = [1, 256], strides = [1, 1]} : vector<8x256xf32> to vector<1x256xf32>
    %44 = arith.mulf %42, %43 : vector<1x256xf32>
    %45 = vector.extract_strided_slice %14 {offsets = [3, 0], sizes = [1, 256], strides = [1, 1]} : vector<8x256xf32> to vector<1x256xf32>
    %46 = arith.mulf %13, %45 : vector<1x256xf32>
    %c240_i32_15 = arith.constant 240 : i32
    %47 = tpu.dynamic_rotate %13 by %c240_i32_15 dim 1 : vector<1x256xf32>, i32 -> vector<1x256xf32>
    %48 = vector.extract_strided_slice %14 {offsets = [4, 0], sizes = [1, 256], strides = [1, 1]} : vector<8x256xf32> to vector<1x256xf32>
    %49 = arith.mulf %47, %48 : vector<1x256xf32>
    %c224_i32_16 = arith.constant 224 : i32
    %50 = tpu.dynamic_rotate %13 by %c224_i32_16 dim 1 : vector<1x256xf32>, i32 -> vector<1x256xf32>
    %51 = vector.extract_strided_slice %14 {offsets = [5, 0], sizes = [1, 256], strides = [1, 1]} : vector<8x256xf32> to vector<1x256xf32>
    %52 = arith.mulf %50, %51 : vector<1x256xf32>
    %c208_i32_17 = arith.constant 208 : i32
    %53 = tpu.dynamic_rotate %13 by %c208_i32_17 dim 1 : vector<1x256xf32>, i32 -> vector<1x256xf32>
    %54 = vector.extract_strided_slice %14 {offsets = [6, 0], sizes = [1, 256], strides = [1, 1]} : vector<8x256xf32> to vector<1x256xf32>
    %55 = arith.mulf %53, %54 : vector<1x256xf32>
    %cst = arith.constant 0.000000e+00 : f32
    %56 = vector.broadcast %cst : f32 to vector<2x256xf32>
    %57 = tpu.concatenate %18, %21, %24, %26, %29, %32, %35, %38, %41, %44, %46, %49, %52, %55, %56 in 0 : vector<1x256xf32>, vector<1x256xf32>, vector<1x256xf32>, vector<1x256xf32>, vector<1x256xf32>, vector<1x256xf32>, vector<1x256xf32>, vector<1x256xf32>, vector<1x256xf32>, vector<1x256xf32>, vector<1x256xf32>, vector<1x256xf32>, vector<1x256xf32>, vector<1x256xf32>, vector<2x256xf32> -> vector<16x256xf32>
    %c0_18 = arith.constant 0 : index
    %c0_19 = arith.constant 0 : index
    %58 = vector.load %arg1[%c0_18, %c0_19] : memref<8x16xf32, #tpu.memory_space<vmem>>, vector<8x16xf32>
    %cst_20 = arith.constant dense<0.000000e+00> : vector<8x256xf32>
    %59 = tpu.matmul %58, %57, %cst_20 {dimension_numbers = #tpu.dot_dimension_numbers<[1], [0], [0], [1], [0, 0, 1, 1], [], []>} : vector<8x16xf32>, vector<16x256xf32>, vector<8x256xf32> -> vector<8x256xf32>
    %60 = vector.extract_strided_slice %59 {offsets = [0, 0], sizes = [1, 256], strides = [1, 1]} : vector<8x256xf32> to vector<1x256xf32>
    %c3_i32 = arith.constant 3 : i32
    %61 = tpu.dynamic_rotate %60 by %c3_i32 dim 1 : vector<1x256xf32>, i32 -> vector<1x256xf32>
    %62 = vector.extract_strided_slice %15 {offsets = [0, 0], sizes = [1, 256], strides = [1, 1]} : vector<8x256xf32> to vector<1x256xf32>
    %63 = arith.mulf %61, %62 : vector<1x256xf32>
    %64 = vector.extract_strided_slice %59 {offsets = [1, 0], sizes = [1, 256], strides = [1, 1]} : vector<8x256xf32> to vector<1x256xf32>
    %c2_i32 = arith.constant 2 : i32
    %65 = tpu.dynamic_rotate %64 by %c2_i32 dim 1 : vector<1x256xf32>, i32 -> vector<1x256xf32>
    %66 = vector.extract_strided_slice %15 {offsets = [1, 0], sizes = [1, 256], strides = [1, 1]} : vector<8x256xf32> to vector<1x256xf32>
    %67 = arith.mulf %65, %66 : vector<1x256xf32>
    %68 = arith.addf %63, %67 : vector<1x256xf32>
    %69 = vector.extract_strided_slice %59 {offsets = [2, 0], sizes = [1, 256], strides = [1, 1]} : vector<8x256xf32> to vector<1x256xf32>
    %c1_i32 = arith.constant 1 : i32
    %70 = tpu.dynamic_rotate %69 by %c1_i32 dim 1 : vector<1x256xf32>, i32 -> vector<1x256xf32>
    %71 = vector.extract_strided_slice %15 {offsets = [2, 0], sizes = [1, 256], strides = [1, 1]} : vector<8x256xf32> to vector<1x256xf32>
    %72 = arith.mulf %70, %71 : vector<1x256xf32>
    %73 = arith.addf %68, %72 : vector<1x256xf32>
    %74 = vector.extract_strided_slice %59 {offsets = [3, 0], sizes = [1, 256], strides = [1, 1]} : vector<8x256xf32> to vector<1x256xf32>
    %75 = vector.extract_strided_slice %15 {offsets = [3, 0], sizes = [1, 256], strides = [1, 1]} : vector<8x256xf32> to vector<1x256xf32>
    %76 = arith.mulf %74, %75 : vector<1x256xf32>
    %77 = arith.addf %73, %76 : vector<1x256xf32>
    %78 = vector.extract_strided_slice %59 {offsets = [4, 0], sizes = [1, 256], strides = [1, 1]} : vector<8x256xf32> to vector<1x256xf32>
    %c255_i32 = arith.constant 255 : i32
    %79 = tpu.dynamic_rotate %78 by %c255_i32 dim 1 : vector<1x256xf32>, i32 -> vector<1x256xf32>
    %80 = vector.extract_strided_slice %15 {offsets = [4, 0], sizes = [1, 256], strides = [1, 1]} : vector<8x256xf32> to vector<1x256xf32>
    %81 = arith.mulf %79, %80 : vector<1x256xf32>
    %82 = arith.addf %77, %81 : vector<1x256xf32>
    %83 = vector.extract_strided_slice %59 {offsets = [5, 0], sizes = [1, 256], strides = [1, 1]} : vector<8x256xf32> to vector<1x256xf32>
    %c254_i32 = arith.constant 254 : i32
    %84 = tpu.dynamic_rotate %83 by %c254_i32 dim 1 : vector<1x256xf32>, i32 -> vector<1x256xf32>
    %85 = vector.extract_strided_slice %15 {offsets = [5, 0], sizes = [1, 256], strides = [1, 1]} : vector<8x256xf32> to vector<1x256xf32>
    %86 = arith.mulf %84, %85 : vector<1x256xf32>
    %87 = arith.addf %82, %86 : vector<1x256xf32>
    %88 = vector.extract_strided_slice %59 {offsets = [6, 0], sizes = [1, 256], strides = [1, 1]} : vector<8x256xf32> to vector<1x256xf32>
    %c253_i32 = arith.constant 253 : i32
    %89 = tpu.dynamic_rotate %88 by %c253_i32 dim 1 : vector<1x256xf32>, i32 -> vector<1x256xf32>
    %90 = vector.extract_strided_slice %15 {offsets = [6, 0], sizes = [1, 256], strides = [1, 1]} : vector<8x256xf32> to vector<1x256xf32>
    %91 = arith.mulf %89, %90 : vector<1x256xf32>
    %92 = arith.addf %87, %91 : vector<1x256xf32>
    %c0_21 = arith.constant 0 : index
    %93 = memref.load %arg2[%c0_21] : memref<1xf32, #tpu.memory_space<smem>>
    %94 = vector.broadcast %93 : f32 to vector<1x256xf32>
    %95 = arith.addf %92, %94 : vector<1x256xf32>
    %cst_22 = arith.constant 0.000000e+00 : f32
    %96 = vector.broadcast %cst_22 : f32 to vector<1x256xf32>
    %97 = arith.subf %96, %95 : vector<1x256xf32>
    %98 = math.exp %97 : vector<1x256xf32>
    %cst_23 = arith.constant 1.000000e+00 : f32
    %99 = vector.broadcast %cst_23 : f32 to vector<1x256xf32>
    %100 = arith.addf %99, %98 : vector<1x256xf32>
    %101 = tpu.reciprocal %100 {approx = true} : vector<1x256xf32> -> vector<1x256xf32>
    %c0_24 = arith.constant 0 : index
    %c0_25 = arith.constant 0 : index
    %c0_26 = arith.constant 0 : index
    %102 = vector.load %arg5[%c0_24, %c0_25, %c0_26] : memref<1x4x256xf32, #tpu.memory_space<vmem>>, vector<1x4x256xf32>
    %103 = vector.shape_cast %102 : vector<1x4x256xf32> to vector<4x256xf32>
    %104 = vector.broadcast %101 : vector<1x256xf32> to vector<4x256xf32>
    %105 = arith.mulf %103, %104 : vector<4x256xf32>
    %c0_27 = arith.constant 0 : index
    %c0_28 = arith.constant 0 : index
    %c0_29 = arith.constant 0 : index
    %106 = vector.load %arg6[%c0_27, %c0_28, %c0_29] : memref<1x4x256xf32, #tpu.memory_space<vmem>>, vector<1x4x256xf32>
    %107 = vector.shape_cast %106 : vector<1x4x256xf32> to vector<4x256xf32>
    %108 = vector.shape_cast %105 : vector<4x256xf32> to vector<1x4x256xf32>
    tpu.vector_store %arg6[%c0_27, %c0_28, %c0_29], %108 {strides = array<i32>} : memref<1x4x256xf32, #tpu.memory_space<vmem>>, vector<1x4x256xf32>,
    return
  }
  func.func @transform_0(%arg0: i32) -> (i32, i32) {
    %c0_i32 = arith.constant 0 : i32
    %c0_i32_0 = arith.constant 0 : i32
    %c0_i32_1 = arith.constant 0 : i32
    return %c0_i32, %c0_i32_0 : i32, i32
  }
  func.func @transform_1(%arg0: i32) -> i32 {
    %c0_i32 = arith.constant 0 : i32
    %c0_i32_0 = arith.constant 0 : i32
    return %c0_i32 : i32
  }
  func.func @transform_2(%arg0: i32) -> (i32, i32) {
    %c0_i32 = arith.constant 0 : i32
    %c0_i32_0 = arith.constant 0 : i32
    %c0_i32_1 = arith.constant 0 : i32
    return %c0_i32, %c0_i32_0 : i32, i32
  }
  func.func @transform_3(%arg0: i32) -> (i32, i32) {
    %c0_i32 = arith.constant 0 : i32
    %c0_i32_0 = arith.constant 0 : i32
    %c0_i32_1 = arith.constant 0 : i32
    return %c0_i32, %c0_i32_0 : i32, i32
  }
  func.func @transform_4(%arg0: i32) -> (i32, i32, i32) {
    %c0_i32 = arith.constant 0 : i32
    %c0_i32_0 = arith.constant 0 : i32
    %c0_i32_1 = arith.constant 0 : i32
    return %arg0, %c0_i32, %c0_i32_0 : i32, i32, i32
  }
  func.func @transform_5(%arg0: i32) -> (i32, i32, i32) {
    %c0_i32 = arith.constant 0 : i32
    %c0_i32_0 = arith.constant 0 : i32
    %c0_i32_1 = arith.constant 0 : i32
    return %arg0, %c0_i32, %c0_i32_0 : i32, i32, i32
  }
}

</mosaic_0001>

<llo_original>
// kernel: tpu_custom_call.1
$region0: #{tpu_custom_call.1}
  #allocation0 [shape = 'u32[]', space=smem, size = 0x4, offset = 0x4, fixed_abs, tag = 'smem constant byte address 0x4 - core index']
  #allocation1 [shape = 'u32[144,128]{1,0:T(1,128)}', space=vmem, size = 0x12000, scoped, tag = 'internal scratch']
  #allocation2 [shape = 'f32[1]{0:T(128)S(6)}', space=smem, size = 0x200, scoped, tag = 'scoped memory for tpu_custom_call.1']
  %s0 = inlined_call_operand.vmem [shape: f32[8,16], index: 0, kind: input, shape index: {}]
  %s1 = inlined_call_operand.<no memory space> [shape: f32[1], index: 1, kind: input, shape index: {}]
  %s2 = inlined_call_operand.vmem [shape: f32[8,256], index: 2, kind: input, shape index: {}]
  %s3 = inlined_call_operand.vmem [shape: f32[8,256], index: 3, kind: input, shape index: {}]
  %s4 = inlined_call_operand.hbm [shape: f32[2,4,256], index: 4, kind: input, shape index: {}, may-alias: {4,5}]
  %s5 = inlined_call_operand.hbm [shape: f32[2,4,256], index: 5, kind: output, shape index: {}, may-alias: {4,5}]
  %s6 = sld [smem:[#allocation0]]
  $region57: #{tpu_custom_call.1} parent=0
    _
  %s8 = ssub.s32 1, %s6
  %s9 = scalar_select 0, %s8, %s6
  %10 = sst [smem:[#allocation2]] %s1
  $region1: #{tpu_custom_call.1} parent=0
    #allocation3 [shape = 'u8[8192]{0}', space=vmem, size = 0x2000, scoped, tag = 'input window, operand 4']
    #allocation4 [shape = 's32[2]{0}', space=sflag, size = 0x8, scoped, tag = 'scoped memory for tpu_custom_call.1']
    #allocation5 [shape = 's32[2]{0}', space=sflag, size = 0x8, scoped, tag = 'scoped memory for tpu_custom_call.1']
    #allocation6 [shape = 'u8[8192]{0}', space=vmem, size = 0x2000, scoped, tag = 'output window, operand 0']
    %11 = vsyncpa [#allocation4], 0
    %s12 = scalar_lea.sflag [#allocation4], 1
    %13 = vsyncpa %s12, 0
    %14 = vsyncpa [#allocation5], 0
    %s15 = scalar_lea.sflag [#allocation5], 1
    %16 = vsyncpa %s15, 0
    loop: start=0, step=1, limit=4
    $region2: #{tpu_custom_call.1} parent=1 // loop_pre_header
      _
    $region3: #{tpu_custom_call.1} parent=1 // loop_header
      %s18 = sphi 0, %s22
      %p19 = scmp.ge.s32.totalorder %s18, 4
      %s26 = sphi 0, %s26
      %s28 = sphi 0, %s26
      %s29 = sphi 0, %s28
      %s43 = sphi 0, %s29
      %s47 = sphi 0, %s47
      %s49 = sphi 0, %s47
      %s50 = sphi 0, %s49
      %s64 = sphi 0, %s50
      %s68 = sphi 0, %s68
      %s70 = sphi 0, %s68
      %s71 = sphi 0, %s70
      %s85 = sphi 0, %s71
      %s89 = sphi 0, %s89
      %s91 = sphi 0, %s89
      %s92 = sphi 0, %s91
      %s106 = sphi 0, %s92
      %s112 = sphi 0, %s114
      %s115 = sphi 0, %s112
      %s116 = sphi 0, %s115
      %s132 = sphi 0, %s116
      %s138 = sphi 0, %s140
      %s141 = sphi 0, %s138
      %s142 = sphi 0, %s141
      %s158 = sphi 0, %s142
    $region4: #{tpu_custom_call.1} parent=1 // loop_header_branch
      %21 = sbr.rel (%p19) target = $region8
    $region5: #{tpu_custom_call.1} parent=1 // loop_body
      %s23 = ssub.s32 %s18, 1
      %s24 = ssub.s32 %s18, 2
      %s25 = sadd.s32 %s18, 1
      %s27 = sadd.s32 %s26, 1
      %p30 = scmp.eq.s32.totalorder %s18, 1
      %p31 = scmp.ne.s32.totalorder %s26, %s28
      %p32 = scmp.eq.s32.totalorder %s18, 0
      %p33 = por %p31, %p32
      %p34 = scmp.ne.s32.totalorder %s26, %s28
      %p35 = scmp.eq.s32.totalorder %s23, 1
      %p36 = por %p34, %p35
      %p37 = scmp.ne.s32.totalorder %s28, %s29
      %p38 = scmp.eq.s32.totalorder %s23, 0
      %p39 = por %p37, %p38
      %p40 = scmp.ne.s32.totalorder %s28, %s29
      %p41 = scmp.eq.s32.totalorder %s24, 1
      %p42 = por %p40, %p41
      %p44 = scmp.ne.s32.totalorder %s29, %s43
      %p45 = scmp.eq.s32.totalorder %s24, 0
      %p46 = por %p44, %p45
      %s48 = sadd.s32 %s47, 1
      %p51 = scmp.eq.s32.totalorder %s18, 1
      %p52 = scmp.ne.s32.totalorder %s47, %s49
      %p53 = scmp.eq.s32.totalorder %s18, 0
      %p54 = por %p52, %p53
      %p55 = scmp.ne.s32.totalorder %s47, %s49
      %p56 = scmp.eq.s32.totalorder %s23, 1
      %p57 = por %p55, %p56
      %p58 = scmp.ne.s32.totalorder %s49, %s50
      %p59 = scmp.eq.s32.totalorder %s23, 0
      %p60 = por %p58, %p59
      %p61 = scmp.ne.s32.totalorder %s49, %s50
      %p62 = scmp.eq.s32.totalorder %s24, 1
      %p63 = por %p61, %p62
      %p65 = scmp.ne.s32.totalorder %s50, %s64
      %p66 = scmp.eq.s32.totalorder %s24, 0
      %p67 = por %p65, %p66
      %s69 = sadd.s32 %s68, 1
      %p72 = scmp.eq.s32.totalorder %s18, 1
      %p73 = scmp.ne.s32.totalorder %s68, %s70
      %p74 = scmp.eq.s32.totalorder %s18, 0
      %p75 = por %p73, %p74
      %p76 = scmp.ne.s32.totalorder %s68, %s70
      %p77 = scmp.eq.s32.totalorder %s23, 1
      %p78 = por %p76, %p77
      %p79 = scmp.ne.s32.totalorder %s70, %s71
      %p80 = scmp.eq.s32.totalorder %s23, 0
      %p81 = por %p79, %p80
      %p82 = scmp.ne.s32.totalorder %s70, %s71
      %p83 = scmp.eq.s32.totalorder %s24, 1
      %p84 = por %p82, %p83
      %p86 = scmp.ne.s32.totalorder %s71, %s85
      %p87 = scmp.eq.s32.totalorder %s24, 0
      %p88 = por %p86, %p87
      %s90 = sadd.s32 %s89, 1
      %p93 = scmp.eq.s32.totalorder %s18, 1
      %p94 = scmp.ne.s32.totalorder %s89, %s91
      %p95 = scmp.eq.s32.totalorder %s18, 0
      %p96 = por %p94, %p95
      %p97 = scmp.ne.s32.totalorder %s89, %s91
      %p98 = scmp.eq.s32.totalorder %s23, 1
      %p99 = por %p97, %p98
      %p100 = scmp.ne.s32.totalorder %s91, %s92
      %p101 = scmp.eq.s32.totalorder %s23, 0
      %p102 = por %p100, %p101
      %p103 = scmp.ne.s32.totalorder %s91, %s92
      %p104 = scmp.eq.s32.totalorder %s24, 1
      %p105 = por %p103, %p104
      %p107 = scmp.ne.s32.totalorder %s92, %s106
      %p108 = scmp.eq.s32.totalorder %s24, 0
      %p109 = por %p107, %p108
      %s110 = ssub.s32 %s18, %s25
      %p111 = scmp.eq.s32.totalorder %s110, 0
      %s113 = sadd.s32 %s112, 1
      %s114 = scalar_select %p111, %s112, %s113
      %p117 = pneg %p111
      %p118 = scmp.eq.s32.totalorder %s18, 1
      %p119 = por %p117, %p118
      %p120 = scmp.ne.s32.totalorder %s112, %s115
      %p121 = scmp.eq.s32.totalorder %s18, 0
      %p122 = por %p120, %p121
      %p123 = scmp.ne.s32.totalorder %s112, %s115
      %p124 = scmp.eq.s32.totalorder %s23, 1
      %p125 = por %p123, %p124
      %p126 = scmp.ne.s32.totalorder %s115, %s116
      %p127 = scmp.eq.s32.totalorder %s23, 0
      %p128 = por %p126, %p127
      %p129 = scmp.ne.s32.totalorder %s115, %s116
      %p130 = scmp.eq.s32.totalorder %s24, 1
      %p131 = por %p129, %p130
      %p133 = scmp.ne.s32.totalorder %s116, %s132
      %p134 = scmp.eq.s32.totalorder %s24, 0
      %p135 = por %p133, %p134
      %s136 = ssub.s32 %s18, %s25
      %p137 = scmp.eq.s32.totalorder %s136, 0
      %s139 = sadd.s32 %s138, 1
      %s140 = scalar_select %p137, %s138, %s139
      %p143 = pneg %p137
      %p144 = scmp.eq.s32.totalorder %s18, 1
      %p145 = por %p143, %p144
      %p146 = scmp.ne.s32.totalorder %s138, %s141
      %p147 = scmp.eq.s32.totalorder %s18, 0
      %p148 = por %p146, %p147
      %p149 = scmp.ne.s32.totalorder %s138, %s141
      %p150 = scmp.eq.s32.totalorder %s23, 1
      %p151 = por %p149, %p150
      %p152 = scmp.ne.s32.totalorder %s141, %s142
      %p153 = scmp.eq.s32.totalorder %s23, 0
      %p154 = por %p152, %p153
      %p155 = scmp.ne.s32.totalorder %s141, %s142
      %p156 = scmp.eq.s32.totalorder %s24, 1
      %p157 = por %p155, %p156
      %p159 = scmp.ne.s32.totalorder %s142, %s158
      %p160 = scmp.eq.s32.totalorder %s24, 0
      %p161 = por %p159, %p160
      %p162 = scmp.le.s32.totalorder 1, %s18
      %p163 = scmp.lt.s32.totalorder %s18, 3
      %p164 = pnand %p162, %p163
      %p165 = pneg %p164
      // Predicated region
      $region9: #{tpu_custom_call.1} parent=5 // pred_check
        _
      $region10: #{tpu_custom_call.1} parent=5 // pred_check_branch
        %167 = sbr.rel (%p164) target = $region12
      $region11: #{tpu_custom_call.1} parent=5 // pred_region
        %s168 = ssub.s32 %s18, 1
        // Predicated region
        $region13: #{tpu_custom_call.1} parent=11 // pred_check
          %p169 = pneg %p39
        $region14: #{tpu_custom_call.1} parent=11 // pred_check_branch
          %171 = sbr.rel (%p169) target = $region16
        $region15: #{tpu_custom_call.1} parent=11 // pred_region
          _
        $region16: #{tpu_custom_call.1} parent=11 // pred_fallthru
          _
        // Predicated region
        $region17: #{tpu_custom_call.1} parent=11 // pred_check
          %p172 = pneg %p60
        $region18: #{tpu_custom_call.1} parent=11 // pred_check_branch
          %174 = sbr.rel (%p172) target = $region20
        $region19: #{tpu_custom_call.1} parent=11 // pred_region
          _
        $region20: #{tpu_custom_call.1} parent=11 // pred_fallthru
          _
        // Predicated region
        $region21: #{tpu_custom_call.1} parent=11 // pred_check
          %p175 = pneg %p81
        $region22: #{tpu_custom_call.1} parent=11 // pred_check_branch
          %177 = sbr.rel (%p175) target = $region24
        $region23: #{tpu_custom_call.1} parent=11 // pred_region
          _
        $region24: #{tpu_custom_call.1} parent=11 // pred_fallthru
          _
        // Predicated region
        $region25: #{tpu_custom_call.1} parent=11 // pred_check
          %p178 = pneg %p102
        $region26: #{tpu_custom_call.1} parent=11 // pred_check_branch
          %180 = sbr.rel (%p178) target = $region28
        $region27: #{tpu_custom_call.1} parent=11 // pred_region
          _
        $region28: #{tpu_custom_call.1} parent=11 // pred_fallthru
          _
      $region12: #{tpu_custom_call.1} parent=5 // pred_fallthru
        _
      %p181 = scmp.lt.s32.totalorder %s18, 2
      // Predicated region
      $region29: #{tpu_custom_call.1} parent=5 // pred_check
        %p182 = pneg %p181
      $region30: #{tpu_custom_call.1} parent=5 // pred_check_branch
        %184 = sbr.rel (%p182) target = $region32
      $region31: #{tpu_custom_call.1} parent=5 // pred_region
        // Predicated region
        $region33: #{tpu_custom_call.1} parent=31 // pred_check
          %p185 = pneg %p122
        $region34: #{tpu_custom_call.1} parent=31 // pred_check_branch
          %187 = sbr.rel (%p185) target = $region36
        $region35: #{tpu_custom_call.1} parent=31 // pred_region
          %s188 = sand.u32 %s112, 1
          %s189 = scalar_lea.sflag [#allocation4], %s188
          %s190 = sand.u32 %s112, 1
          %s191 = smul.addr %s190, 8
          %s192 = scalar_lea.vmem [#allocation3], %s191
          %s194 = ssub.s32 128, 128
          %195 = vsyncadd %s189, %s194
          %s196 = smul.addr %s18, 2
          %s197 = smul.addr %s196, 64
          %s198 = scalar_lea.hbm %s4, %s197
          %s200 = sshll.u32 %s192, 4
          %s201 = int_to_ptr.vmem [resolvable:$true] %s200
          %203 = dma.hbm_to_vmem [thread:$0]  %s198, 128, %s201, %s189
        $region36: #{tpu_custom_call.1} parent=31 // pred_fallthru
          _
      $region32: #{tpu_custom_call.1} parent=5 // pred_fallthru
        _
      %p204 = scmp.le.s32.totalorder 1, %s18
      %p205 = scmp.lt.s32.totalorder %s18, 3
      %p206 = pnand %p204, %p205
      %p207 = pneg %p206
      // Predicated region
      $region37: #{tpu_custom_call.1} parent=5 // pred_check
        _
      $region38: #{tpu_custom_call.1} parent=5 // pred_check_branch
        %209 = sbr.rel (%p206) target = $region40
      $region39: #{tpu_custom_call.1} parent=5 // pred_region
        %s210 = ssub.s32 %s18, 1
        %s211 = sand.u32 %s115, 1
        %s212 = scalar_lea.sflag [#allocation4], %s211
        %s213 = sand.u32 %s115, 1
        %s214 = smul.addr %s213, 8
        %s215 = scalar_lea.vmem [#allocation3], %s214
        // Predicated region
        $region41: #{tpu_custom_call.1} parent=39 // pred_check
          %p216 = pneg %p128
        $region42: #{tpu_custom_call.1} parent=39 // pred_check_branch
          %218 = sbr.rel (%p216) target = $region44
        $region43: #{tpu_custom_call.1} parent=39 // pred_region
          %219 = dma.done %s212, 128
        $region44: #{tpu_custom_call.1} parent=39 // pred_fallthru
          _
        %p220 = pneg %p39
        %p221 = pneg %p36
        %p222 = pneg %p60
        %p223 = pneg %p57
        %p224 = pneg %p81
        %p225 = pneg %p78
        %p226 = pneg %p102
        %p227 = pneg %p99
        %s228 = sand.u32 %s115, 1
        %s229 = scalar_lea.sflag [#allocation4], %s228
        %s230 = sand.u32 %s115, 1
        %s231 = smul.addr %s230, 8
        %s232 = scalar_lea.vmem [#allocation3], %s231
        %p233 = pneg %p128
        %p234 = pneg %p125
        %p235 = pneg %p154
        %p236 = pneg %p151
        %s237 = sand.u32 %s141, 1
        %s238 = scalar_lea.sflag [#allocation5], %s237
        %s239 = sand.u32 %s141, 1
        %s240 = smul.addr %s239, 8
        %s241 = scalar_lea.vmem [#allocation6], %s240
        %v242 = vld [vmem:[%s215] ss:$4 sm:$0x3]
        %s243 = scalar_lea.vmem %s215, 1 [#allocation3]
        %v244 = vld [vmem:[%s243] ss:$4 sm:$0x3]
        %v245 = vmax.f32 %v242, %v244
        %v246 = vadd.f32 %v242, %v244
        %s247 = scalar_lea.vmem %s215, 2 [#allocation3]
        %v248 = vld [vmem:[%s247] ss:$4 sm:$0x3]
        %v249 = vmax.f32 %v245, %v248
        %v250 = vadd.f32 %v246, %v248
        %s251 = scalar_lea.vmem %s215, 3 [#allocation3]
        %v252 = vld [vmem:[%s251] ss:$4 sm:$0x3]
        %v253 = vmax.f32 %v249, %v252
        %v254 = vadd.f32 %v250, %v252
        %v255 = vld [vmem:[%s2] sm:$0xff]
        %v256 = vld [vmem:[%s2 + $0x8] sm:$0xff]
        %v257 = vld [vmem:[%s3] sm:$0xff]
        %v258 = vld [vmem:[%s3 + $0x8] sm:$0xff]
        %v260 = vlaneseq
        %v261 = vshrl.u32 %v260, 7
        %v262 = vsub.s32 0, %v261
        %v263 = vrot.slane %v253, %v262
        %v264 = vlaneseq
        %v265 = vshrl.u32 %v264, 7
        %v266 = vsub.s32 1, %v265
        %v267 = vrot.slane %v253, %v266
        %270 = vrot.lane.b32.xlu0 %v263, 48
        %v271 = vpop.permute.xlu0 %270
        %272 = vrot.lane.b32.xlu0 %v267, 48
        %v273 = vpop.permute.xlu0 %272
        %v274 = vlaneseq
        %v275 = vand.u32 %v274, 127
        %vm276 = vcmp.lt.s32.totalorder %v275, 48
        %v277 = vsel %vm276, %v271, %v273
        %v278 = vsel %vm276, %v273, %v271
        %v279 = vmul.f32 %v278, %v255
        %v280 = vmul.f32 %v277, %v256
        %281 = vrot.lane.b32.xlu0 %v263, 32
        %v282 = vpop.permute.xlu0 %281
        %283 = vrot.lane.b32.xlu0 %v267, 32
        %v284 = vpop.permute.xlu0 %283
        %vm285 = vcmp.lt.s32.totalorder %v275, 32
        %v286 = vsel %vm285, %v282, %v284
        %v287 = vsel %vm285, %v284, %v282
        %v290 = vrot.slane %v255, 1
        %v291 = vrot.slane %v256, 1
        %v294 = vmul.f32 %v287, %v290
        %v295 = vmul.f32 %v286, %v291
        %296 = vrot.lane.b32.xlu0 %v263, 16
        %v297 = vpop.permute.xlu0 %296
        %298 = vrot.lane.b32.xlu0 %v267, 16
        %v299 = vpop.permute.xlu0 %298
        %vm300 = vcmp.lt.s32.totalorder %v275, 16
        %v301 = vsel %vm300, %v297, %v299
        %v302 = vsel %vm300, %v299, %v297
        %v303 = vrot.slane %v255, 2
        %v304 = vrot.slane %v256, 2
        %v307 = vmul.f32 %v302, %v303
        %v308 = vmul.f32 %v301, %v304
        %v309 = vcombine.low %v255, %v256
        %v311 = vunpack.c.l.s4 1966171168
        %v312 = vunpack.c.0.s8 %v311
        %v313 = vlaneseq
        %v314 = vshrl.u32 %v313, 7
        %v315 = vsub.s32 %v312, %v314
        %v316 = vrot.slane %v309, %v315
        %v317 = vcombine.high %v316, %v316
        %v319 = vunpack.c.l.s4 1966171168
        %v320 = vunpack.c.0.s8 %v319
        %v321 = vlaneseq
        %v322 = vshrl.u32 %v321, 7
        %v323 = vsub.s32 %v320, %v322
        %v324 = vrot.slane %v317, %v323
        %v325 = vcombine.high %v324, %v324
        %v327 = vmul.f32 %v253, %v325
        %328 = vrot.lane.b32.xlu0 %v263, 112
        %v329 = vpop.permute.xlu0 %328
        %330 = vrot.lane.b32.xlu0 %v267, 112
        %v331 = vpop.permute.xlu0 %330
        %vm332 = vcmp.lt.s32.totalorder %v275, 112
        %v333 = vsel %vm332, %v329, %v331
        %v334 = vsel %vm332, %v331, %v329
        %v335 = vrot.slane %v255, 4
        %v336 = vrot.slane %v256, 4
        %v339 = vmul.f32 %v333, %v335
        %v340 = vmul.f32 %v334, %v336
        %341 = vrot.lane.b32.xlu0 %v263, 96
        %v342 = vpop.permute.xlu0 %341
        %343 = vrot.lane.b32.xlu0 %v267, 96
        %v344 = vpop.permute.xlu0 %343
        %vm345 = vcmp.lt.s32.totalorder %v275, 96
        %v346 = vsel %vm345, %v342, %v344
        %v347 = vsel %vm345, %v344, %v342
        %v348 = vrot.slane %v255, 5
        %v349 = vrot.slane %v256, 5
        %v352 = vmul.f32 %v346, %v348
        %v353 = vmul.f32 %v347, %v349
        %354 = vrot.lane.b32.xlu0 %v263, 80
        %v355 = vpop.permute.xlu0 %354
        %356 = vrot.lane.b32.xlu0 %v267, 80
        %v357 = vpop.permute.xlu0 %356
        %vm358 = vcmp.lt.s32.totalorder %v275, 80
        %v359 = vsel %vm358, %v355, %v357
        %v360 = vsel %vm358, %v357, %v355
        %v361 = vrot.slane %v255, 6
        %v362 = vrot.slane %v256, 6
        %v365 = vmul.f32 %v359, %v361
        %v366 = vmul.f32 %v360, %v362
        %v368 = vlaneseq
        %v369 = vshrl.u32 %v368, 7
        %v370 = vsub.s32 0, %v369
        %v371 = vrot.slane %v254, %v370
        %v372 = vlaneseq
        %v373 = vshrl.u32 %v372, 7
        %v374 = vsub.s32 1, %v373
        %v375 = vrot.slane %v254, %v374
        %378 = vrot.lane.b32.xlu0 %v371, 48
        %v379 = vpop.permute.xlu0 %378
        %380 = vrot.lane.b32.xlu0 %v375, 48
        %v381 = vpop.permute.xlu0 %380
        %v382 = vsel %vm276, %v379, %v381
        %v383 = vsel %vm276, %v381, %v379
        %v384 = vmul.f32 %v383, %v255
        %v385 = vmul.f32 %v382, %v256
        %386 = vrot.lane.b32.xlu0 %v371, 32
        %v387 = vpop.permute.xlu0 %386
        %388 = vrot.lane.b32.xlu0 %v375, 32
        %v389 = vpop.permute.xlu0 %388
        %v390 = vsel %vm285, %v387, %v389
        %v391 = vsel %vm285, %v389, %v387
        %v392 = vmul.f32 %v391, %v290
        %v393 = vmul.f32 %v390, %v291
        %394 = vrot.lane.b32.xlu0 %v371, 16
        %v395 = vpop.permute.xlu0 %394
        %396 = vrot.lane.b32.xlu0 %v375, 16
        %v397 = vpop.permute.xlu0 %396
        %v398 = vsel %vm300, %v395, %v397
        %v399 = vsel %vm300, %v397, %v395
        %v400 = vmul.f32 %v399, %v303
        %v401 = vmul.f32 %v398, %v304
        %v402 = vmul.f32 %v254, %v325
        %403 = vrot.lane.b32.xlu0 %v371, 112
        %v404 = vpop.permute.xlu0 %403
        %405 = vrot.lane.b32.xlu0 %v375, 112
        %v406 = vpop.permute.xlu0 %405
        %v407 = vsel %vm332, %v404, %v406
        %v408 = vsel %vm332, %v406, %v404
        %v409 = vmul.f32 %v407, %v335
        %v410 = vmul.f32 %v408, %v336
        %411 = vrot.lane.b32.xlu0 %v371, 96
        %v412 = vpop.permute.xlu0 %411
        %413 = vrot.lane.b32.xlu0 %v375, 96
        %v414 = vpop.permute.xlu0 %413
        %v415 = vsel %vm345, %v412, %v414
        %v416 = vsel %vm345, %v414, %v412
        %v417 = vmul.f32 %v415, %v348
        %v418 = vmul.f32 %v416, %v349
        %419 = vrot.lane.b32.xlu0 %v371, 80
        %v420 = vpop.permute.xlu0 %419
        %421 = vrot.lane.b32.xlu0 %v375, 80
        %v422 = vpop.permute.xlu0 %421
        %v423 = vsel %vm358, %v420, %v422
        %v424 = vsel %vm358, %v422, %v420
        %v425 = vmul.f32 %v423, %v361
        %v426 = vmul.f32 %v424, %v362
        %v429 = vrot.slane %v294, 7
        %v430 = vrot.slane %v295, 7
        %v435 = vrot.slane %v307, 6
        %v436 = vrot.slane %v308, 6
        %v440 = vlaneseq
        %v441 = vshrl.u32 %v440, 7
        %v442 = vsub.s32 0, %v441
        %v443 = vrot.slane %v327, %v442
        %v444 = vlaneseq
        %v445 = vshrl.u32 %v444, 7
        %v446 = vsub.s32 1, %v445
        %v447 = vrot.slane %v327, %v446
        %v452 = vrot.slane %v339, 4
        %v453 = vrot.slane %v340, 4
        %v458 = vrot.slane %v352, 3
        %v459 = vrot.slane %v353, 3
        %v464 = vrot.slane %v365, 2
        %v465 = vrot.slane %v366, 2
        %v470 = vrot.slane %v384, 1
        %v471 = vrot.slane %v385, 1
        %v476 = vrot.slane %v400, 7
        %v477 = vrot.slane %v401, 7
        %v481 = vlaneseq
        %v482 = vshrl.u32 %v481, 7
        %v483 = vsub.s32 0, %v482
        %v484 = vrot.slane %v402, %v483
        %v485 = vlaneseq
        %v486 = vshrl.u32 %v485, 7
        %v487 = vsub.s32 1, %v486
        %v488 = vrot.slane %v402, %v487
        %v493 = vrot.slane %v409, 5
        %v494 = vrot.slane %v410, 5
        %v499 = vrot.slane %v417, 4
        %v500 = vrot.slane %v418, 4
        %v505 = vrot.slane %v425, 3
        %v506 = vrot.slane %v426, 3
        %vm509 = vcmask 1040384
        %v510 = vsel %vm509, %v279, %v429
        %v511 = vsel %vm509, %v280, %v430
        %vm512 = vcmask 1041408
        %v513 = vsel %vm512, %v510, %v435
        %v514 = vsel %vm512, %v511, %v436
        %vm515 = vcmask 1042432
        %v516 = vsel %vm515, %v513, %v443
        %v517 = vsel %vm515, %v514, %v447
        %vm518 = vcmask 1043456
        %v519 = vsel %vm518, %v516, %v452
        %v520 = vsel %vm518, %v517, %v453
        %vm521 = vcmask 1044480
        %v522 = vsel %vm521, %v519, %v458
        %v523 = vsel %vm521, %v520, %v459
        %vm524 = vcmask 1045504
        %v525 = vsel %vm524, %v522, %v464
        %v526 = vsel %vm524, %v523, %v465
        %vm527 = vcmask 1046528
        %v528 = vsel %vm527, %v525, %v470
        %v529 = vsel %vm527, %v526, %v471
        %v530 = vsel %vm509, %v392, %v476
        %v531 = vsel %vm509, %v393, %v477
        %v532 = vsel %vm512, %v530, %v484
        %v533 = vsel %vm512, %v531, %v488
        %v534 = vsel %vm515, %v532, %v493
        %v535 = vsel %vm515, %v533, %v494
        %v536 = vsel %vm518, %v534, %v499
        %v537 = vsel %vm518, %v535, %v500
        %v538 = vsel %vm521, %v536, %v505
        %v539 = vsel %vm521, %v537, %v506
        %v540 = vsel %vm524, %v538, 0.0
        %v541 = vsel %vm524, %v539, 0.0
        %v542 = vld [vmem:[%s0] sm:$0xff]
        %vm543 = vcmask 130048
        %v545 = vsel %vm543, %v542, 0
        %547 = vmatprep.subr.mxu0 %v529
        %548 = vmatpush1.msra.mxu0 %v528
        %549 = vmatprep.subr.mxu0 %v541
        %550 = vmatpush1.msra.mxu0 %v540
        %551 = vmatprep.subr.mxu0 0.0
        %552 = vmatpush1.msra.mxu0 0.0
        %553 = vmatprep.subr.mxu0 0.0
        %554 = vmatpush1.msra.mxu0 0.0
        %555 = vmatprep.subr.mxu0 0.0
        %556 = vmatpush1.msra.mxu0 0.0
        %557 = vmatprep.subr.mxu0 0.0
        %558 = vmatpush1.msra.mxu0 0.0
        %559 = vmatprep.subr.mxu0 0.0
        %560 = vmatpush1.msra.mxu0 0.0
        %561 = vmatprep.subr.mxu0 0.0
        %562 = vmatpush1.msra.mxu0 0.0
        %563 = vmatprep.subr.mxu0 0.0
        %564 = vmatpush1.msra.mxu0 0.0
        %565 = vmatprep.subr.mxu0 0.0
        %566 = vmatpush1.msra.mxu0 0.0
        %567 = vmatprep.subr.mxu0 0.0
        %568 = vmatpush1.msra.mxu0 0.0
        %569 = vmatprep.subr.mxu0 0.0
        %570 = vmatpush1.msra.mxu0 0.0
        %571 = vmatprep.subr.mxu0 0.0
        %572 = vmatpush1.msra.mxu0 0.0
        %573 = vmatprep.subr.mxu0 0.0
        %574 = vmatpush1.msra.mxu0 0.0
        %575 = vmatprep.subr.mxu0 0.0
        %576 = vmatpush1.msra.mxu0 0.0
        %577 = vmatprep.subr.mxu0 0.0
        %578 = vmatpush1.msra.mxu0 0.0
        %579 = vmatprep.subr.mxu0 0.0
        %580 = vmatpush1.msra.mxu0 0.0
        %581 = vmatprep.subr.mxu0 0.0
        %582 = vmatpush1.msra.mxu0 0.0
        %583 = vmatprep.subr.mxu0 0.0
        %584 = vmatpush1.msra.mxu0 0.0
        %585 = vmatprep.subr.mxu0 0.0
        %586 = vmatpush1.msra.mxu0 0.0
        %587 = vmatprep.subr.mxu0 0.0
        %588 = vmatpush1.msra.mxu0 0.0
        %589 = vmatprep.subr.mxu0 0.0
        %590 = vmatpush1.msra.mxu0 0.0
        %591 = vmatprep.subr.mxu0 0.0
        %592 = vmatpush1.msra.mxu0 0.0
        %593 = vmatprep.subr.mxu0 0.0
        %594 = vmatpush1.msra.mxu0 0.0
        %595 = vmatprep.subr.mxu0 0.0
        %596 = vmatpush1.msra.mxu0 0.0
        %597 = vmatprep.subr.mxu0 0.0
        %598 = vmatpush1.msra.mxu0 0.0
        %599 = vmatprep.subr.mxu0 0.0
        %600 = vmatpush1.msra.mxu0 0.0
        %601 = vmatprep.subr.mxu0 0.0
        %602 = vmatpush1.msra.mxu0 0.0
        %603 = vmatprep.subr.mxu0 0.0
        %604 = vmatpush1.msra.mxu0 0.0
        %605 = vmatprep.subr.mxu0 0.0
        %606 = vmatpush1.msra.mxu0 0.0
        %607 = vmatprep.subr.mxu0 0.0
        %608 = vmatpush1.msra.mxu0 0.0
        %609 = vmatprep.subr.mxu0 0.0
        %610 = vmatpush1.msra.mxu0 0.0
        %611 = vmatprep.mubr.f32.mxu0 0.0
        %612 = vmatmul.mubr.f32.gmra.mrb[0].mxu0 %v545
        %v613 = vpop.f32.mrb[0].mxu0
        %v614 = vadd.f32 0.0, %v613
        %v615 = vpop.f32.mrb[0].mxu0
        %v616 = vadd.f32 0.0, %v615
        %617 = vdwg.mxu0
        %618 = vrot.lane.b32.xlu0 %v614, 3
        %v619 = vpop.permute.xlu0 %618
        %620 = vrot.lane.b32.xlu0 %v616, 3
        %v621 = vpop.permute.xlu0 %620
        %vm622 = vcmp.lt.s32.totalorder %v275, 3
        %v623 = vsel %vm622, %v619, %v621
        %v624 = vsel %vm622, %v621, %v619
        %v625 = vmul.f32 %v624, %v257
        %v626 = vmul.f32 %v623, %v258
        %v629 = vrot.slane %v614, 1
        %v630 = vrot.slane %v616, 1
        %633 = vrot.lane.b32.xlu0 %v629, 2
        %v634 = vpop.permute.xlu0 %633
        %635 = vrot.lane.b32.xlu0 %v630, 2
        %v636 = vpop.permute.xlu0 %635
        %vm637 = vcmp.lt.s32.totalorder %v275, 2
        %v638 = vsel %vm637, %v634, %v636
        %v639 = vsel %vm637, %v636, %v634
        %v642 = vrot.slane %v257, 1
        %v643 = vrot.slane %v258, 1
        %v646 = vmul.f32 %v639, %v642
        %v647 = vmul.f32 %v638, %v643
        %v648 = vadd.f32 %v625, %v646
        %v649 = vadd.f32 %v626, %v647
        %v650 = vrot.slane %v614, 2
        %v651 = vrot.slane %v616, 2
        %654 = vrot.lane.b32.xlu0 %v650, 1
        %v655 = vpop.permute.xlu0 %654
        %656 = vrot.lane.b32.xlu0 %v651, 1
        %v657 = vpop.permute.xlu0 %656
        %vm658 = vcmp.lt.s32.totalorder %v275, 1
        %v659 = vsel %vm658, %v655, %v657
        %v660 = vsel %vm658, %v657, %v655
        %v661 = vrot.slane %v257, 2
        %v662 = vrot.slane %v258, 2
        %v665 = vmul.f32 %v660, %v661
        %v666 = vmul.f32 %v659, %v662
        %v667 = vadd.f32 %v648, %v665
        %v668 = vadd.f32 %v649, %v666
        %v669 = vmul.f32 %v614, %v257
        %v670 = vmul.f32 %v616, %v258
        %v673 = vrot.slane %v669, 3
        %v674 = vrot.slane %v670, 3
        %v677 = vadd.f32 %v667, %v673
        %v678 = vadd.f32 %v668, %v674
        %v679 = vrot.slane %v614, 4
        %v680 = vrot.slane %v616, 4
        %683 = vrot.lane.b32.xlu0 %v679, 127
        %v684 = vpop.permute.xlu0 %683
        %685 = vrot.lane.b32.xlu0 %v680, 127
        %v686 = vpop.permute.xlu0 %685
        %vm687 = vcmp.lt.s32.totalorder %v275, 127
        %v688 = vsel %vm687, %v684, %v686
        %v689 = vsel %vm687, %v686, %v684
        %v690 = vrot.slane %v257, 4
        %v691 = vrot.slane %v258, 4
        %v694 = vmul.f32 %v688, %v690
        %v695 = vmul.f32 %v689, %v691
        %v696 = vadd.f32 %v677, %v694
        %v697 = vadd.f32 %v678, %v695
        %v698 = vrot.slane %v614, 5
        %v699 = vrot.slane %v616, 5
        %702 = vrot.lane.b32.xlu0 %v698, 126
        %v703 = vpop.permute.xlu0 %702
        %704 = vrot.lane.b32.xlu0 %v699, 126
        %v705 = vpop.permute.xlu0 %704
        %vm706 = vcmp.lt.s32.totalorder %v275, 126
        %v707 = vsel %vm706, %v703, %v705
        %v708 = vsel %vm706, %v705, %v703
        %v709 = vrot.slane %v257, 5
        %v710 = vrot.slane %v258, 5
        %v713 = vmul.f32 %v707, %v709
        %v714 = vmul.f32 %v708, %v710
        %v715 = vadd.f32 %v696, %v713
        %v716 = vadd.f32 %v697, %v714
        %v717 = vrot.slane %v614, 6
        %v718 = vrot.slane %v616, 6
        %721 = vrot.lane.b32.xlu0 %v717, 125
        %v722 = vpop.permute.xlu0 %721
        %723 = vrot.lane.b32.xlu0 %v718, 125
        %v724 = vpop.permute.xlu0 %723
        %vm725 = vcmp.lt.s32.totalorder %v275, 125
        %v726 = vsel %vm725, %v722, %v724
        %v727 = vsel %vm725, %v724, %v722
        %v728 = vrot.slane %v257, 6
        %v729 = vrot.slane %v258, 6
        %v732 = vmul.f32 %v726, %v728
        %v733 = vmul.f32 %v727, %v729
        %v734 = vadd.f32 %v715, %v732
        %v735 = vadd.f32 %v716, %v733
        %s736 = sld [smem:[#allocation2]]
        %v737 = vstv %s736
        %v738 = vadd.f32 %v734, %v737
        %v739 = vadd.f32 %v735, %v737
        %v740 = vsub.f32 0.0, %v738
        %v741 = vsub.f32 0.0, %v739
        %v742 = vmul.f32 %v740, 1.442695
        %v743 = vpow.pop %v742
        %v744 = vmul.f32 %v741, 1.442695
        %v745 = vpow.pop %v744
        %v746 = vadd.f32 %v743, 1.0
        %v747 = vadd.f32 %v745, 1.0
        %v748 = vrcp.pop %v746
        %v749 = vrcp.pop %v747
        %v750 = vld [vmem:[%s215] sm:$0xff]
        %v751 = vlaneseq
        %v752 = vshrl.u32 %v751, 7
        %v753 = vsub.s32 0, %v752
        %v754 = vrot.slane %v748, %v753
        %v755 = vlaneseq
        %v756 = vshrl.u32 %v755, 7
        %v757 = vsub.s32 0, %v756
        %v758 = vrot.slane %v749, %v757
        %v761 = vcombine.low %v754, %v758
        %v763 = vmul.f32 %v750, %v761
        %764 = vst [vmem:[%s241] sm:$0xff] %v763
        %s765 = sand.u32 %s141, 1
        %s766 = scalar_lea.sflag [#allocation5], %s765
        %s767 = sand.u32 %s141, 1
        %s768 = smul.addr %s767, 8
        %s769 = scalar_lea.vmem [#allocation6], %s768
        // Predicated region
        $region45: #{tpu_custom_call.1} parent=39 // pred_check
          %p770 = pneg %p151
        $region46: #{tpu_custom_call.1} parent=39 // pred_check_branch
          %772 = sbr.rel (%p770) target = $region48
        $region47: #{tpu_custom_call.1} parent=39 // pred_region
          %s774 = ssub.s32 128, 128
          %775 = vsyncadd %s766, %s774
          %s776 = smul.addr %s23, 2
          %s777 = smul.addr %s776, 64
          %s778 = scalar_lea.hbm %s5, %s777
          %s780 = sshll.u32 %s769, 4
          %s781 = int_to_ptr.vmem [resolvable:$true] %s780
          %783 = dma.vmem_to_hbm [thread:$0]  %s781, 128, %s778, %s766
        $region48: #{tpu_custom_call.1} parent=39 // pred_fallthru
          _
      $region40: #{tpu_custom_call.1} parent=5 // pred_fallthru
        _
      %p784 = scmp.le.s32.totalorder 2, %s18
      // Predicated region
      $region49: #{tpu_custom_call.1} parent=5 // pred_check
        %p785 = pneg %p784
      $region50: #{tpu_custom_call.1} parent=5 // pred_check_branch
        %787 = sbr.rel (%p785) target = $region52
      $region51: #{tpu_custom_call.1} parent=5 // pred_region
        %s788 = ssub.s32 %s18, 2
        // Predicated region
        $region53: #{tpu_custom_call.1} parent=51 // pred_check
          %p789 = pneg %p157
        $region54: #{tpu_custom_call.1} parent=51 // pred_check_branch
          %791 = sbr.rel (%p789) target = $region56
        $region55: #{tpu_custom_call.1} parent=51 // pred_region
          %s792 = sand.u32 %s142, 1
          %s793 = scalar_lea.sflag [#allocation5], %s792
          %s794 = sand.u32 %s142, 1
          %s795 = smul.addr %s794, 8
          %s796 = scalar_lea.vmem [#allocation6], %s795
          %797 = dma.done %s793, 128
        $region56: #{tpu_custom_call.1} parent=51 // pred_fallthru
          _
      $region52: #{tpu_custom_call.1} parent=5 // pred_fallthru
        _
    $region6: #{tpu_custom_call.1} parent=1 // loop_footer
      %s22 = sadd.s32 1, %s18
    $region7: #{tpu_custom_call.1} parent=1 // loop_footer_branch
      %17 = sbr.rel target = $region3
    $region8: #{tpu_custom_call.1} parent=1 // loop_exit
      _
    %798 = vsyncpa [#allocation4], 1
    %s799 = scalar_lea.sflag [#allocation4], 1
    %800 = vsyncpa %s799, 1
    %801 = vsyncpa [#allocation5], 1
    %s802 = scalar_lea.sflag [#allocation5], 1
    %803 = vsyncpa %s802, 1

</llo_original>
